<compile_context>
chip_gen: v5e
topology: v5e:2x2
jax: 0.10.0
libtpu: 0.0.40
codegen_flags: <defaults>
</compile_context>

<pallas_src>
import functools

import jax
import jax.numpy as jnp
from jax.experimental import pallas as pl
from jax.experimental.pallas import tpu as pltpu


def _round_up(x, m):
    return ((x + m - 1) // m) * m


def _focal_loss_kernel(logits_ref, target_ref, wt_ref, out_ref, *,
                       gamma, n_total, tile_n, num_tiles):
    i = pl.program_id(0)

    logits = logits_ref[...].astype(jnp.float32)            # (TILE_N, C)
    tgt = target_ref[...]                                    # (TILE_N, 1) int32
    w_t = wt_ref[...].astype(jnp.float32)                    # (TILE_N, 1)

    # --- cross entropy: gather target logit, no full logp materialized ------
    m = jnp.max(logits, axis=-1, keepdims=True)              # (TILE_N, 1)
    shifted = logits - m
    lse = jnp.log(jnp.sum(jnp.exp(shifted), axis=-1, keepdims=True))

    cls_idx = jax.lax.broadcasted_iota(jnp.int32, logits.shape, 1)
    logit_t = jnp.sum(jnp.where(cls_idx == tgt, shifted, 0.0),
                      axis=-1, keepdims=True)                # (TILE_N, 1)

    nll = lse - logit_t                                      # (TILE_N, 1)
    ce = w_t * nll                                           # (TILE_N, 1)

    # --- focal reweighting (gamma specialized at trace time) ----------------
    p = jnp.exp(-ce)
    if gamma == 0.0:
        focal = ce
    elif float(gamma).is_integer():
        omp = 1.0 - p
        f = omp
        for _ in range(int(gamma) - 1):
            f = f * omp
        focal = f * ce
    else:
        omp = jnp.maximum(1.0 - p, 0.0)
        focal = jnp.where(omp > 0.0, omp ** jnp.float32(gamma), 0.0) * ce

    # --- per-tile partial sum (tail masking only where it can matter) -------
    out_ref[0, 0] = jnp.sum(focal)

    if num_tiles * tile_n != n_total:  # trace-time: grid has padded tail rows
        @pl.when(i == num_tiles - 1)
        def _():
            row = i * tile_n + jax.lax.broadcasted_iota(
                jnp.int32, focal.shape, 0)
            out_ref[0, 0] = jnp.sum(jnp.where(row < n_total, focal, 0.0))


def focal_loss_pallas(logits, target, weight=None, gamma=0.0, tile_n=None):
    """logits: (N, C) float, target: (N,) int, weight: optional (C,) float."""
    n, c = logits.shape
    target = target.astype(jnp.int32)

    # Gather per-sample class weight outside the kernel (trivial XLA gather).
    if weight is None:
        w_t = jnp.ones((n,), dtype=jnp.float32)
    else:
        w_t = weight.astype(jnp.float32)[target]

    target2d = target.reshape(n, 1)
    wt2d = w_t.reshape(n, 1)

    # Dtype-aware sublane multiple for the second-to-last block dim.
    itemsize = jnp.dtype(logits.dtype).itemsize
    sub = {4: 8, 2: 16, 1: 32}.get(itemsize, 8)

    # Generation-aware VMEM budget: 3/4 of physical, capped at 96 MiB
    # (v5e/v6e: 128 MiB -> 96 MiB scoped; v7x: 64 MiB -> 48 MiB scoped).
    try:
        vmem_cap = int(pltpu.get_tpu_info().vmem_capacity_bytes)
    except Exception:
        vmem_cap = 64 * 1024 * 1024  # conservative (v7x-sized) fallback
    vmem_limit = min(vmem_cap * 3 // 4, 96 * 1024 * 1024)

    if tile_n is None:
        # ~5-6x the logits-tile bytes are live at once (2x double-buffered
        # input + a few (TILE_N, C) f32 temporaries), so keep the tile itself
        # to ~1/8 of the scoped limit: 12 MiB on v5e/v6e, 6 MiB on v7x.
        tile_budget = vmem_limit // 8
        rows = max(sub, (tile_budget // max(c * itemsize, 1)) // sub * sub)
        tile_n = min(_round_up(n, sub), rows)
    tile_n = max(sub, (int(tile_n) // sub) * sub)

    num_tiles = pl.cdiv(n, tile_n)

    kernel = functools.partial(
        _focal_loss_kernel, gamma=float(gamma), n_total=n, tile_n=tile_n,
        num_tiles=num_tiles)

    partials = pl.pallas_call(
        kernel,
        out_shape=jax.ShapeDtypeStruct((num_tiles, 1), jnp.float32),
        grid_spec=pltpu.PrefetchScalarGridSpec(
            num_scalar_prefetch=0,
            grid=(num_tiles,),
            in_specs=[
                pl.BlockSpec((tile_n, c), lambda i: (i, 0)),   # logits tile
                pl.BlockSpec((tile_n, 1), lambda i: (i, 0)),   # target tile
                pl.BlockSpec((tile_n, 1), lambda i: (i, 0)),   # weight[target]
            ],
            out_specs=pl.BlockSpec(
                (1, 1), lambda i: (i, 0), memory_space=pltpu.SMEM
            ),
        ),
        compiler_params=pltpu.CompilerParams(
            dimension_semantics=("parallel",),   # disjoint per-tile outputs
            vmem_limit_bytes=vmem_limit,
        ),
    )(logits, target2d, wt2d)

    # Final (tree-reduced) mean in the wrapper.
    return jnp.sum(partials) / jnp.float32(n)


def focal_loss_ref(logits, target, weight=None, gamma=0.0):
    """Pure-JAX reference mirroring torch F.cross_entropy + focal_loss."""
    n, c = logits.shape
    if weight is None:
        weight = jnp.ones((c,), dtype=jnp.float32)
    logp = jax.nn.log_softmax(logits.astype(jnp.float32), axis=-1)
    nll = -jnp.take_along_axis(logp, target[:, None], axis=-1)[:, 0]
    ce = weight[target] * nll
    p = jnp.exp(-ce)
    return jnp.mean((1.0 - p) ** gamma * ce)


if __name__ == "__main__":
    key = jax.random.PRNGKey(0)
    k1, k2, k3 = jax.random.split(key, 3)

    # Small shapes; N intentionally not a multiple of the explicit tile to
    # exercise the masked-partial-tile and multi-tile (grid>1) paths.
    N, C = 20, 32
    logits = jax.random.normal(k1, (N, C), dtype=jnp.float32)
    target = jax.random.randint(k2, (N,), 0, C, dtype=jnp.int32)
    cls_w = jax.random.uniform(k3, (C,), minval=0.5, maxval=1.5,
                               dtype=jnp.float32)

    ok = True
    for gamma in (0.0, 1.0, 2.0, 1.5):
        for w in (None, cls_w):
            for tile in (None, 8):   # default single tile, and grid=3 tiling
                got = jax.block_until_ready(
                    focal_loss_pallas(logits, target, weight=w, gamma=gamma,
                                      tile_n=tile))
                want = focal_loss_ref(logits, target, weight=w, gamma=gamma)
                if not jnp.allclose(got, want, rtol=1e-5, atol=1e-5):
                    ok = False
                    print(f"MISMATCH gamma={gamma} weighted={w is not None} "
                          f"tile={tile}: kernel={got} ref={want}")

    if ok:
        print("KERNEL_OK")
</pallas_src>

<mosaic_0001>
module attributes {stable_mosaic.version = 11 : i64} {
  func.func @_focal_loss_kernel(%arg0: i32, %arg1: memref<24x32xf32, #tpu.memory_space<vmem>>, %arg2: memref<24x1xi32, #tpu.memory_space<vmem>>, %arg3: memref<24x1xf32, #tpu.memory_space<vmem>>, %arg4: memref<1x1xf32, #tpu.memory_space<smem>>) attributes {dimension_semantics = [#tpu.dimension_semantics<parallel>], iteration_bounds = array<i64: 1>, scalar_prefetch = 0 : i64, scratch_operands = 0 : i64, tpu.core_type = #tpu.core_type<tc>, window_params = [{transform_indices = @transform_0, window_bounds = array<i64: 24, 32>}, {transform_indices = @transform_1, window_bounds = array<i64: 24, 1>}, {transform_indices = @transform_2, window_bounds = array<i64: 24, 1>}, {transform_indices = @transform_3, window_bounds = array<i64: 1, 1>}]} {
    %c0 = arith.constant 0 : index
    %c0_0 = arith.constant 0 : index
    %0 = vector.load %arg1[%c0, %c0_0] : memref<24x32xf32, #tpu.memory_space<vmem>>, vector<24x32xf32>
    %c0_1 = arith.constant 0 : index
    %c0_2 = arith.constant 0 : index
    %1 = vector.load %arg2[%c0_1, %c0_2] : memref<24x1xi32, #tpu.memory_space<vmem>>, vector<24x1xi32>
    %c0_3 = arith.constant 0 : index
    %c0_4 = arith.constant 0 : index
    %2 = vector.load %arg3[%c0_3, %c0_4] : memref<24x1xf32, #tpu.memory_space<vmem>>, vector<24x1xf32>
    %cst = arith.constant dense<0xFF800000> : vector<24xf32>
    %3 = vector.multi_reduction <maximumf>, %0, %cst [1] : vector<24x32xf32> to vector<24xf32>
    %4 = vector.shape_cast %3 : vector<24xf32> to vector<24x1xf32>
    %5 = vector.broadcast %4 : vector<24x1xf32> to vector<24x32xf32>
    %6 = arith.subf %0, %5 : vector<24x32xf32>
    %7 = math.exp %6 : vector<24x32xf32>
    %cst_5 = arith.constant dense<0.000000e+00> : vector<24xf32>
    %8 = vector.multi_reduction <add>, %7, %cst_5 [1] : vector<24x32xf32> to vector<24xf32>
    %9 = vector.shape_cast %8 : vector<24xf32> to vector<24x1xf32>
    %10 = math.log %9 : vector<24x1xf32>
    %11 = tpu.iota {dimensions = array<i32: 1>} : vector<24x32xi32>
    %12 = vector.broadcast %1 : vector<24x1xi32> to vector<24x32xi32>
    %13 = arith.cmpi eq, %11, %12 : vector<24x32xi32>
    %cst_6 = arith.constant 0.000000e+00 : f32
    %14 = vector.broadcast %cst_6 : f32 to vector<24x32xf32>
    %15 = arith.select %13, %6, %14 : vector<24x32xi1>, vector<24x32xf32>
    %cst_7 = arith.constant dense<0.000000e+00> : vector<24xf32>
    %16 = vector.multi_reduction <add>, %15, %cst_7 [1] : vector<24x32xf32> to vector<24xf32>
    %17 = vector.shape_cast %16 : vector<24xf32> to vector<24x1xf32>
    %18 = arith.subf %10, %17 : vector<24x1xf32>
    %19 = arith.mulf %2, %18 : vector<24x1xf32>
    %20 = vector.shape_cast %19 : vector<24x1xf32> to vector<1x24x1xf32>
    %cst_8 = arith.constant dense<0.000000e+00> : vector<1xf32>
    %21 = vector.multi_reduction <add>, %20, %cst_8 [1, 2] : vector<1x24x1xf32> to vector<1xf32>
    %22 = vector.shape_cast %21 : vector<1xf32> to vector<1x1x1xf32>
    %23 = vector.extract %22[0, 0, 0] : f32 from vector<1x1x1xf32>
    %c0_9 = arith.constant 0 : index
    %c0_10 = arith.constant 0 : index
    %24 = memref.load %arg4[%c0_9, %c0_10] : memref<1x1xf32, #tpu.memory_space<smem>>
    memref.store %23, %arg4[%c0_9, %c0_10] : memref<1x1xf32, #tpu.memory_space<smem>>
    %c0_i32 = arith.constant 0 : i32
    %25 = arith.cmpi eq, %arg0, %c0_i32 : i32
    %26 = arith.extui %25 : i1 to i32
    %c0_i32_11 = arith.constant 0 : i32
    %27 = arith.cmpi ne, %26, %c0_i32_11 : i32
    scf.if %27 {
      %c24_i32 = arith.constant 24 : i32
      %28 = arith.muli %arg0, %c24_i32 : i32
      %29 = tpu.iota {dimensions = array<i32: 0>} : vector<24x1xi32>
      %30 = vector.broadcast %28 : i32 to vector<24x1xi32>
      %31 = arith.addi %30, %29 : vector<24x1xi32>
      %c20_i32 = arith.constant 20 : i32
      %32 = vector.broadcast %c20_i32 : i32 to vector<24x1xi32>
      %33 = arith.cmpi slt, %31, %32 : vector<24x1xi32>
      %cst_12 = arith.constant 0.000000e+00 : f32
      %34 = vector.broadcast %cst_12 : f32 to vector<24x1xf32>
      %35 = arith.select %33, %19, %34 : vector<24x1xi1>, vector<24x1xf32>
      %36 = vector.shape_cast %35 : vector<24x1xf32> to vector<1x24x1xf32>
      %cst_13 = arith.constant dense<0.000000e+00> : vector<1xf32>
      %37 = vector.multi_reduction <add>, %36, %cst_13 [1, 2] : vector<1x24x1xf32> to vector<1xf32>
      %38 = vector.shape_cast %37 : vector<1xf32> to vector<1x1x1xf32>
      %39 = vector.extract %38[0, 0, 0] : f32 from vector<1x1x1xf32>
      %c0_14 = arith.constant 0 : index
      %c0_15 = arith.constant 0 : index
      %40 = memref.load %arg4[%c0_14, %c0_15] : memref<1x1xf32, #tpu.memory_space<smem>>
      memref.store %39, %arg4[%c0_14, %c0_15] : memref<1x1xf32, #tpu.memory_space<smem>>
    } else {
    }
    return
  }
  func.func @transform_0(%arg0: i32) -> (i32, i32) {
    %c0_i32 = arith.constant 0 : i32
    %c0_i32_0 = arith.constant 0 : i32
    return %arg0, %c0_i32 : i32, i32
  }
  func.func @transform_1(%arg0: i32) -> (i32, i32) {
    %c0_i32 = arith.constant 0 : i32
    %c0_i32_0 = arith.constant 0 : i32
    return %arg0, %c0_i32 : i32, i32
  }
  func.func @transform_2(%arg0: i32) -> (i32, i32) {
    %c0_i32 = arith.constant 0 : i32
    %c0_i32_0 = arith.constant 0 : i32
    return %arg0, %c0_i32 : i32, i32
  }
  func.func @transform_3(%arg0: i32) -> (i32, i32) {
    %c0_i32 = arith.constant 0 : i32
    %c0_i32_0 = arith.constant 0 : i32
    return %arg0, %c0_i32 : i32, i32
  }
}

</mosaic_0001>

<llo_original>
// kernel: tpu_custom_call.1
$region0: #{tpu_custom_call.1}
  #allocation0 [shape = 'u32[]', space=smem, size = 0x4, offset = 0x4, fixed_abs, tag = 'smem constant byte address 0x4 - core index']
  #allocation1 [shape = 'u32[72,128]{1,0:T(1,128)}', space=vmem, size = 0x9000, scoped, tag = 'internal scratch']
  %s0 = inlined_call_operand.vmem [shape: f32[20,32], index: 0, kind: input, shape index: {}]
  %s1 = inlined_call_operand.vmem [shape: s32[20,1], index: 1, kind: input, shape index: {}]
  %s2 = inlined_call_operand.vmem [shape: f32[20,1], index: 2, kind: input, shape index: {}]
  %s3 = inlined_call_operand.hbm [shape: f32[1,1], index: 3, kind: output, shape index: {}]
  %s4 = sld [smem:[#allocation0]]
  $region26: #{tpu_custom_call.1} parent=0
    _
  %s6 = ssub.s32 1, %s4
  %s7 = scalar_select 0, %s6, %s4
  $region1: #{tpu_custom_call.1} parent=0
    #allocation2 [shape = 'u8[512]{0}', space=smem, size = 0x200, scoped, tag = 'output window, operand 0, single buffered']
    #allocation3 [shape = 's32[1]{0}', space=sflag, size = 0x4, scoped, tag = 'scoped memory for tpu_custom_call.1']
    %8 = vsyncpa [#allocation3], 0
    // Predicated region
    $region2: #{tpu_custom_call.1} parent=1 // pred_check
      _
    $region3: #{tpu_custom_call.1} parent=1 // pred_check_branch
      %10 = sbr.rel (0) target = $region5
    $region4: #{tpu_custom_call.1} parent=1 // pred_region
      _
    $region5: #{tpu_custom_call.1} parent=1 // pred_fallthru
      _
    // Predicated region
    $region6: #{tpu_custom_call.1} parent=1 // pred_check
      _
    $region7: #{tpu_custom_call.1} parent=1 // pred_check_branch
      %12 = sbr.rel (0) target = $region9
    $region8: #{tpu_custom_call.1} parent=1 // pred_region
      _
    $region9: #{tpu_custom_call.1} parent=1 // pred_fallthru
      _
    // Predicated region
    $region10: #{tpu_custom_call.1} parent=1 // pred_check
      _
    $region11: #{tpu_custom_call.1} parent=1 // pred_check_branch
      %14 = sbr.rel (0) target = $region13
    $region12: #{tpu_custom_call.1} parent=1 // pred_region
      _
    $region13: #{tpu_custom_call.1} parent=1 // pred_fallthru
      _
    %v15 = vld [vmem:[%s0] sm:$0xff]
    %v16 = vld [vmem:[%s0 + $0x8] sm:$0xff]
    %v17 = vld [vmem:[%s0 + $0x10] sm:$0xff]
    %v18 = vld [vmem:[%s1] sm:$0xff]
    %v19 = vld [vmem:[%s1 + $0x8] sm:$0xff]
    %v20 = vld [vmem:[%s1 + $0x10] sm:$0xff]
    %v21 = vld [vmem:[%s2] sm:$0xff]
    %v22 = vld [vmem:[%s2 + $0x8] sm:$0xff]
    %v23 = vld [vmem:[%s2 + $0x10] sm:$0xff]
    %vm24 = vcmask 261120
    %v25 = vsel %vm24, %v15, -inf
    %26 = vmax.xlane.f32.xlu0 %v25
    %v27 = vpop.xlane.xlu0 %26
    %v28 = vsel %vm24, %v16, -inf
    %29 = vmax.xlane.f32.xlu0 %v28
    %v30 = vpop.xlane.xlu0 %29
    %v31 = vsel %vm24, %v17, -inf
    %32 = vmax.xlane.f32.xlu0 %v31
    %v33 = vpop.xlane.xlu0 %32
    %v34 = vsub.f32 %v15, %v27
    %v35 = vsub.f32 %v16, %v30
    %v36 = vsub.f32 %v17, %v33
    %v37 = vmul.f32 %v34, 1.442695
    %v38 = vpow.pop %v37
    %v39 = vmul.f32 %v35, 1.442695
    %v40 = vpow.pop %v39
    %v41 = vmul.f32 %v36, 1.442695
    %v42 = vpow.pop %v41
    %v43 = vsel %vm24, %v38, 0.0
    %44 = vadd.xlane.f32.xlu0 %v43
    %v45 = vpop.xlane.xlu0 %44
    %v46 = vsel %vm24, %v40, 0.0
    %47 = vadd.xlane.f32.xlu0 %v46
    %v48 = vpop.xlane.xlu0 %47
    %v49 = vsel %vm24, %v42, 0.0
    %50 = vadd.xlane.f32.xlu0 %v49
    %v51 = vpop.xlane.xlu0 %50
    %v52 = vlog2.pop %v45
    %v53 = vmul.f32 %v52, 0.6931472
    %v54 = vlog2.pop %v48
    %v55 = vmul.f32 %v54, 0.6931472
    %v56 = vlog2.pop %v51
    %v57 = vmul.f32 %v56, 0.6931472
    %v58 = vlaneseq
    %v59 = vand.u32 %v58, 127
    %60 = vset.pattern.permute.xlu0 0
    %61 = vperm.xlu0 %60, %v18
    %v62 = vpop.permute.xlu0 %61
    %63 = vset.pattern.permute.xlu0 0
    %64 = vperm.xlu0 %63, %v19
    %v65 = vpop.permute.xlu0 %64
    %66 = vset.pattern.permute.xlu0 0
    %67 = vperm.xlu0 %66, %v20
    %v68 = vpop.permute.xlu0 %67
    %vm69 = vcmp.eq.s32.totalorder %v59, %v62
    %vm70 = vcmp.eq.s32.totalorder %v59, %v65
    %vm71 = vcmp.eq.s32.totalorder %v59, %v68
    %v72 = vsel %vm69, %v34, 0.0
    %v73 = vsel %vm70, %v35, 0.0
    %v74 = vsel %vm71, %v36, 0.0
    %v75 = vsel %vm24, %v72, 0.0
    %76 = vadd.xlane.f32.xlu0 %v75
    %v77 = vpop.xlane.xlu0 %76
    %v78 = vsel %vm24, %v73, 0.0
    %79 = vadd.xlane.f32.xlu0 %v78
    %v80 = vpop.xlane.xlu0 %79
    %v81 = vsel %vm24, %v74, 0.0
    %82 = vadd.xlane.f32.xlu0 %v81
    %v83 = vpop.xlane.xlu0 %82
    %v84 = vsub.f32 %v53, %v77
    %v85 = vsub.f32 %v55, %v80
    %v86 = vsub.f32 %v57, %v83
    %v87 = vmul.f32 %v21, %v84
    %v88 = vmul.f32 %v22, %v85
    %v89 = vmul.f32 %v23, %v86
    %vm90 = vcmask 7168
    %v91 = vsel %vm90, %v87, 0.0
    %v92 = vsel %vm90, %v88, 0.0
    %v93 = vadd.f32 %v91, %v92
    %v94 = vsel %vm90, %v89, 0.0
    %v95 = vadd.f32 %v93, %v94
    %96 = vadd.xlane.f32.xlu0 %v95
    %v97 = vpop.xlane.xlu0 %96
    %v98 = vrot.slane %v97, 4
    %v99 = vadd.f32 %v97, %v98
    %v100 = vrot.slane %v99, 2
    %v101 = vadd.f32 %v99, %v100
    %v102 = vrot.slane %v101, 1
    %v103 = vadd.f32 %v101, %v102
    %s104 = vtos %v103
    %s105 = scalar_lea.smem [#allocation2], 0
    %106 = sst [smem:[%s105]] %s104
    %p107 = scmp.eq.s32.totalorder 0, 0
    // Predicated region
    $region14: #{tpu_custom_call.1} parent=1 // pred_check
      %p108 = pneg %p107
    $region15: #{tpu_custom_call.1} parent=1 // pred_check_branch
      %110 = sbr.rel (%p108) target = $region17
    $region16: #{tpu_custom_call.1} parent=1 // pred_region
      %s111 = smul.u32 0, 24
      %v112 = vlaneseq
      %v113 = vshrl.u32 %v112, 7
      %v114 = vadd.s32 %v113, 8
      %v115 = vadd.s32 %v113, 16
      %v116 = vstv %s111
      %v117 = vadd.s32 %v116, %v113
      %v118 = vadd.s32 %v116, %v114
      %v119 = vadd.s32 %v116, %v115
      %vm120 = vcmp.lt.s32.totalorder %v117, 20
      %vm121 = vcmp.lt.s32.totalorder %v118, 20
      %vm122 = vcmp.lt.s32.totalorder %v119, 20
      %v123 = vsel %vm120, %v87, 0.0
      %v124 = vsel %vm121, %v88, 0.0
      %v125 = vsel %vm122, %v89, 0.0
      %v126 = vsel %vm90, %v123, 0.0
      %v127 = vsel %vm90, %v124, 0.0
      %v128 = vadd.f32 %v126, %v127
      %v129 = vsel %vm90, %v125, 0.0
      %v130 = vadd.f32 %v128, %v129
      %131 = vadd.xlane.f32.xlu0 %v130
      %v132 = vpop.xlane.xlu0 %131
      %v133 = vrot.slane %v132, 4
      %v134 = vadd.f32 %v132, %v133
      %v135 = vrot.slane %v134, 2
      %v136 = vadd.f32 %v134, %v135
      %v137 = vrot.slane %v136, 1
      %v138 = vadd.f32 %v136, %v137
      %s139 = vtos %v138
      %140 = sst [smem:[%s105]] %s139
    $region17: #{tpu_custom_call.1} parent=1 // pred_fallthru
      _
    // Predicated region
    $region18: #{tpu_custom_call.1} parent=1 // pred_check
      _
    $region19: #{tpu_custom_call.1} parent=1 // pred_check_branch
      %142 = sbr.rel (0) target = $region21
    $region20: #{tpu_custom_call.1} parent=1 // pred_region
      %144 = vsyncadd [#allocation3], 0
      %s146 = sshll.u32 %s3, 4
      %s147 = int_to_ptr.hbm [resolvable:$true] %s146
      %149 = dma.smem_to_hbm [#allocation2], 16, %s147, [#allocation3]
    $region21: #{tpu_custom_call.1} parent=1 // pred_fallthru
      _
    // Predicated region
    $region22: #{tpu_custom_call.1} parent=1 // pred_check
      _
    $region23: #{tpu_custom_call.1} parent=1 // pred_check_branch
      %151 = sbr.rel (0) target = $region25
    $region24: #{tpu_custom_call.1} parent=1 // pred_region
      %153 = dma.done [#allocation3], 16
    $region25: #{tpu_custom_call.1} parent=1 // pred_fallthru
      _
    %154 = sfence
    %155 = vsyncpa [#allocation3], 1

</llo_original>
